<compile_context>
chip_gen: v7x
topology: tpu7x:2x2x1
jax: 0.10.0
libtpu: 0.0.40
codegen_flags: <defaults>
</compile_context>

<pallas_src>
import jax
import jax.numpy as jnp
from jax.experimental import pallas as pl
from jax.experimental.pallas import tpu as pltpu

# ---------------------------------------------------------------------------
# Config (mirrors LatentVideoVAEArgs + continuous_video_dict overrides)
# ---------------------------------------------------------------------------
SPATIAL_COMPRESSION = 16      # encoder_config.update(dict(spatial_compression=16))
TEMPORAL_COMPRESSION = 8      # encoder_config.update(dict(temporal_compression=8))
LATENT_CHANNELS = 16          # Cosmos continuous tokenizer latent width
MODEL_DTYPE = jnp.bfloat16    # args.model_dtype = 'bfloat16'

_MAX_TILE_M = 2048            # rows per grid step (bf16: multiple of 16)
_VMEM_LIMIT_BYTES = 48 * 1024 * 1024   # <= v7x 64 MiB physical; ample on v5e/v6e


def _round_up(x, m):
    return ((x + m - 1) // m) * m


def _tile_m(M):
    """Row tile: as large as possible, multiple of 16, and >=2 grid steps when
    feasible so v7x's two TensorCores both get work on the 'parallel' axis."""
    if M > _MAX_TILE_M:
        return _MAX_TILE_M            # cdiv grid; Pallas masks the final partial block
    if M >= 64 and M % 32 == 0:
        return M // 2                 # two equal full blocks -> both v7x TCs busy
    return M                          # tiny input: single full-extent block (always legal)


# ---------------------------------------------------------------------------
# Pallas kernels (bf16 operands on the MXU, f32 accumulation, f32 bias add)
# ---------------------------------------------------------------------------
def _encode_kernel(x_ref, w_ref, b_ref, o_ref):
    # x: (tm, C*p*p) bf16, w: (C*p*p, 16) bf16, b: (1, 16) f32 -> o: (tm, 16) bf16
    acc = jnp.dot(x_ref[...], w_ref[...], preferred_element_type=jnp.float32)
    o_ref[...] = (acc + b_ref[...]).astype(o_ref.dtype)


def _decode_kernel(z_ref, w_ref, b_ref, o_ref):
    # z: (tm, 16) bf16, w: (16, C*p*p) bf16, b: (1, C*p*p) f32 -> o: (tm, C*p*p) bf16
    acc = jnp.dot(z_ref[...], w_ref[...], preferred_element_type=jnp.float32)
    o_ref[...] = (acc + b_ref[...]).astype(o_ref.dtype)


def _fused_ae_kernel(x_ref, we_ref, be_ref, wd_ref, bd_ref, o_ref):
    # encode: tokens @ w_enc + b_enc -> bf16 latent (never leaves VMEM)
    lat = jnp.dot(x_ref[...], we_ref[...], preferred_element_type=jnp.float32)
    lat = (lat + be_ref[...]).astype(MODEL_DTYPE)   # same bf16 rounding as the
                                                    # standalone encode->decode path
    # decode: latent @ w_dec + b_dec -> reconstructed patch tokens
    rec = jnp.dot(lat, wd_ref[...], preferred_element_type=jnp.float32)
    o_ref[...] = (rec + bd_ref[...]).astype(o_ref.dtype)


def _run_tiled(kernel_fn, tokens, params, out_n, flops):
    """tokens: (M, K) bf16; params: small full-array weights/biases; -> (M, out_n)."""
    M, K = tokens.shape
    tm = _tile_m(M)
    in_specs = [pl.BlockSpec((tm, K), lambda i: (i, 0))]
    for p in params:
        in_specs.append(pl.BlockSpec(p.shape, lambda i: (0, 0)))
    bytes_accessed = int(
        M * K * tokens.dtype.itemsize
        + M * out_n * jnp.dtype(MODEL_DTYPE).itemsize
        + sum(int(p.size) * p.dtype.itemsize for p in params))
    return pl.pallas_call(
        kernel_fn,
        out_shape=jax.ShapeDtypeStruct((M, out_n), MODEL_DTYPE),
        grid=(pl.cdiv(M, tm),),
        in_specs=in_specs,
        out_specs=pl.BlockSpec((tm, out_n), lambda i: (i, 0)),
        compiler_params=pltpu.CompilerParams(
            dimension_semantics=("parallel",),
            vmem_limit_bytes=_VMEM_LIMIT_BYTES),
        cost_estimate=pl.CostEstimate(
            flops=int(flops), transcendentals=0, bytes_accessed=bytes_accessed),
    )(tokens, *params)


# ---------------------------------------------------------------------------
# Patchify / un-patchify glue (plain JAX; a single fused XLA pass under jit)
# ---------------------------------------------------------------------------
def _patchify(x, p, out_dtype):
    # f32 NCHW frames -> bf16 patch tokens in one fused transpose+convert pass.
    B, C, T, H, W = x.shape
    nH, nW = H // p, W // p
    xp = x.reshape(B, C, T, nH, p, nW, p)
    xp = jnp.transpose(xp, (0, 2, 3, 5, 1, 4, 6))           # B,T,nH,nW,C,p,p
    tokens = xp.reshape(B * T * nH * nW, C * p * p).astype(out_dtype)
    return tokens, (B, C, T, nH, nW)


def _unpatchify(tokens, dims, p):
    B, C, T, nH, nW = dims
    xp = tokens.reshape(B, T, nH, nW, C, p, p)
    xp = jnp.transpose(xp, (0, 4, 1, 2, 5, 3, 6))           # B,C,T,nH,p,nW,p
    return xp.reshape(B, C, T, nH * p, nW * p)


# ---------------------------------------------------------------------------
# Synthetic COSMOSContinuousVideoAE
# ---------------------------------------------------------------------------
class COSMOSContinuousVideoAE:
    def __init__(self, in_channels=3, key=None):
        if key is None:
            key = jax.random.PRNGKey(0)
        k1, k2, k3, k4 = jax.random.split(key, 4)
        p = SPATIAL_COMPRESSION
        patch_dim = in_channels * p * p
        self.in_channels = in_channels
        self.patch = p
        self.patch_dim = patch_dim

        # Synthetic stand-ins for the Cosmos-Tokenize1-CI encoder/decoder weights.
        self.w_enc = (jax.random.normal(k1, (patch_dim, LATENT_CHANNELS), jnp.float32)
                      / jnp.sqrt(patch_dim)).astype(MODEL_DTYPE)
        self.b_enc = 0.01 * jax.random.normal(k2, (1, LATENT_CHANNELS), jnp.float32)
        self.w_dec = (jax.random.normal(k3, (LATENT_CHANNELS, patch_dim), jnp.float32)
                      / jnp.sqrt(LATENT_CHANNELS)).astype(MODEL_DTYPE)
        self.b_dec = 0.01 * jax.random.normal(k4, (1, patch_dim), jnp.float32)

        # jit the public paths so patchify + bf16 cast fuse into one XLA pass.
        self._encode_jit = jax.jit(self._encode_impl)
        self._decode_jit = jax.jit(self._decode_impl)
        self._forward_jit = jax.jit(self._forward_impl)

    # ---------------- shared input normalization ----------------
    def _to_bcthw(self, frames):
        x = frames
        if x.ndim == 4:                       # (B,C,H,W) -> (B,C,1,H,W)
            x = x[:, :, None, :, :]
        B, C, T, H, W = x.shape
        p = self.patch
        assert C == self.in_channels, (C, self.in_channels)
        assert H % p == 0 and W % p == 0, "H/W must be multiples of spatial_compression"
        return x

    # ---------------- encode ----------------
    def _encode_impl(self, frames):
        x = self._to_bcthw(frames)
        tokens, dims = _patchify(x, self.patch, MODEL_DTYPE)
        M = tokens.shape[0]
        lat = _run_tiled(_encode_kernel, tokens, [self.w_enc, self.b_enc],
                         LATENT_CHANNELS,
                         flops=2 * M * self.patch_dim * LATENT_CHANNELS)
        B, _, T, nH, nW = dims
        lat = lat.reshape(B, T, nH, nW, LATENT_CHANNELS)
        # Cosmos latent layout (B, 16, T, h, w); the latent is tiny so this
        # transpose is negligible.  TODO(synk): a channels-last latent interface
        # would remove it entirely.
        return jnp.transpose(lat, (0, 4, 1, 2, 3))

    # ---------------- decode ----------------
    def _decode_impl(self, encoded):
        z = encoded.astype(MODEL_DTYPE)
        B, Cz, T, nH, nW = z.shape
        tokens = jnp.transpose(z, (0, 2, 3, 4, 1)).reshape(B * T * nH * nW, Cz)
        M = tokens.shape[0]
        rec = _run_tiled(_decode_kernel, tokens, [self.w_dec, self.b_dec],
                         self.patch_dim, flops=2 * M * Cz * self.patch_dim)
        x = _unpatchify(rec, (B, self.in_channels, T, nH, nW), self.patch)
        if x.ndim == 5 and x.shape[2] == 1:                  # squeeze T=1
            x = x[:, :, 0]
        return x

    # ---------------- forward (fused encode -> decode) ----------------
    def _forward_impl(self, frames):
        x = self._to_bcthw(frames)
        tokens, dims = _patchify(x, self.patch, MODEL_DTYPE)
        M = tokens.shape[0]
        rec = _run_tiled(
            _fused_ae_kernel, tokens,
            [self.w_enc, self.b_enc, self.w_dec, self.b_dec],
            self.patch_dim,
            flops=2 * M * self.patch_dim * LATENT_CHANNELS
                  + 2 * M * LATENT_CHANNELS * self.patch_dim)
        out = _unpatchify(rec, dims, self.patch)
        if out.ndim == 5 and out.shape[2] == 1:
            out = out[:, :, 0]
        return out

    # ---------------- public API (mirrors the PyTorch module) ----------------
    def encode(self, frames):
        return self._encode_jit(frames)

    def decode(self, encoded):
        return self._decode_jit(encoded)

    def __call__(self, frames):
        return self._forward_jit(frames)


# ---------------------------------------------------------------------------
# main
# ---------------------------------------------------------------------------
if __name__ == "__main__":
    key = jax.random.PRNGKey(0)
    # Small image-tokenizer shapes: batch=2, RGB, 32x32 (2x2 latent grid @16x).
    x = jax.random.normal(key, (2, 3, 32, 32), jnp.float32)

    model = COSMOSContinuousVideoAE(in_channels=3, key=jax.random.PRNGKey(0))

    # Fused forward (single Pallas kernel for both projections).
    out = jax.block_until_ready(model(x))
    assert out.shape == (2, 3, 32, 32), out.shape
    assert out.dtype == MODEL_DTYPE, out.dtype

    # Standalone encode / decode path, and consistency with the fused forward.
    z = jax.block_until_ready(model.encode(x))
    assert z.shape == (2, LATENT_CHANNELS, 1, 2, 2), z.shape
    out2 = jax.block_until_ready(model.decode(z))
    assert out2.shape == (2, 3, 32, 32), out2.shape
    assert jnp.allclose(out.astype(jnp.float32), out2.astype(jnp.float32),
                        atol=5e-2, rtol=5e-2), "fused forward != encode->decode"

    print("KERNEL_OK")
</pallas_src>

<mosaic_0001>
module attributes {stable_mosaic.version = 11 : i64} {
  func.func @_fused_ae_kernel(%arg0: i32, %arg1: memref<8x768xbf16, #tpu.memory_space<vmem>>, %arg2: memref<768x16xbf16, #tpu.memory_space<vmem>>, %arg3: memref<1x16xf32, #tpu.memory_space<vmem>>, %arg4: memref<16x768xbf16, #tpu.memory_space<vmem>>, %arg5: memref<1x768xf32, #tpu.memory_space<vmem>>, %arg6: memref<8x768xbf16, #tpu.memory_space<vmem>>) attributes {dimension_semantics = [#tpu.dimension_semantics<parallel>], iteration_bounds = array<i64: 1>, scalar_prefetch = 0 : i64, scratch_operands = 0 : i64, tpu.core_type = #tpu.core_type<tc>, window_params = [{transform_indices = @transform_0, window_bounds = array<i64: 8, 768>}, {pipeline_mode = #tpu.pipeline_mode<synchronous>, transform_indices = @transform_1, window_bounds = array<i64: 768, 16>}, {pipeline_mode = #tpu.pipeline_mode<synchronous>, transform_indices = @transform_2, window_bounds = array<i64: 1, 16>}, {pipeline_mode = #tpu.pipeline_mode<synchronous>, transform_indices = @transform_3, window_bounds = array<i64: 16, 768>}, {pipeline_mode = #tpu.pipeline_mode<synchronous>, transform_indices = @transform_4, window_bounds = array<i64: 1, 768>}, {transform_indices = @transform_5, window_bounds = array<i64: 8, 768>}]} {
    %c0 = arith.constant 0 : index
    %c0_0 = arith.constant 0 : index
    %0 = vector.load %arg1[%c0, %c0_0] : memref<8x768xbf16, #tpu.memory_space<vmem>>, vector<8x768xbf16>
    %c0_1 = arith.constant 0 : index
    %c0_2 = arith.constant 0 : index
    %1 = vector.load %arg2[%c0_1, %c0_2] : memref<768x16xbf16, #tpu.memory_space<vmem>>, vector<768x16xbf16>
    %cst = arith.constant dense<0.000000e+00> : vector<8x16xf32>
    %2 = tpu.matmul %0, %1, %cst {dimension_numbers = #tpu.dot_dimension_numbers<[1], [0], [0], [1], [0, 0, 1, 1], [], []>} : vector<8x768xbf16>, vector<768x16xbf16>, vector<8x16xf32> -> vector<8x16xf32>
    %c0_3 = arith.constant 0 : index
    %c0_4 = arith.constant 0 : index
    %3 = vector.load %arg3[%c0_3, %c0_4] : memref<1x16xf32, #tpu.memory_space<vmem>>, vector<1x16xf32>
    %4 = vector.broadcast %3 : vector<1x16xf32> to vector<8x16xf32>
    %5 = arith.addf %2, %4 : vector<8x16xf32>
    %6 = arith.truncf %5 : vector<8x16xf32> to vector<8x16xbf16>
    %c0_5 = arith.constant 0 : index
    %c0_6 = arith.constant 0 : index
    %7 = vector.load %arg4[%c0_5, %c0_6] : memref<16x768xbf16, #tpu.memory_space<vmem>>, vector<16x768xbf16>
    %cst_7 = arith.constant dense<0.000000e+00> : vector<8x768xf32>
    %8 = tpu.matmul %6, %7, %cst_7 {dimension_numbers = #tpu.dot_dimension_numbers<[1], [0], [0], [1], [0, 0, 1, 1], [], []>} : vector<8x16xbf16>, vector<16x768xbf16>, vector<8x768xf32> -> vector<8x768xf32>
    %c0_8 = arith.constant 0 : index
    %c0_9 = arith.constant 0 : index
    %9 = vector.load %arg5[%c0_8, %c0_9] : memref<1x768xf32, #tpu.memory_space<vmem>>, vector<1x768xf32>
    %10 = vector.broadcast %9 : vector<1x768xf32> to vector<8x768xf32>
    %11 = arith.addf %8, %10 : vector<8x768xf32>
    %12 = arith.truncf %11 : vector<8x768xf32> to vector<8x768xbf16>
    %c0_10 = arith.constant 0 : index
    %c0_11 = arith.constant 0 : index
    %13 = vector.load %arg6[%c0_10, %c0_11] : memref<8x768xbf16, #tpu.memory_space<vmem>>, vector<8x768xbf16>
    tpu.vector_store %arg6[%c0_10, %c0_11], %12 {strides = array<i32>} : memref<8x768xbf16, #tpu.memory_space<vmem>>, vector<8x768xbf16>,
    return
  }
  func.func @transform_0(%arg0: i32) -> (i32, i32) {
    %c0_i32 = arith.constant 0 : i32
    %c0_i32_0 = arith.constant 0 : i32
    return %arg0, %c0_i32 : i32, i32
  }
  func.func @transform_1(%arg0: i32) -> (i32, i32) {
    %c0_i32 = arith.constant 0 : i32
    %c0_i32_0 = arith.constant 0 : i32
    %c0_i32_1 = arith.constant 0 : i32
    return %c0_i32, %c0_i32_0 : i32, i32
  }
  func.func @transform_2(%arg0: i32) -> (i32, i32) {
    %c0_i32 = arith.constant 0 : i32
    %c0_i32_0 = arith.constant 0 : i32
    %c0_i32_1 = arith.constant 0 : i32
    return %c0_i32, %c0_i32_0 : i32, i32
  }
  func.func @transform_3(%arg0: i32) -> (i32, i32) {
    %c0_i32 = arith.constant 0 : i32
    %c0_i32_0 = arith.constant 0 : i32
    %c0_i32_1 = arith.constant 0 : i32
    return %c0_i32, %c0_i32_0 : i32, i32
  }
  func.func @transform_4(%arg0: i32) -> (i32, i32) {
    %c0_i32 = arith.constant 0 : i32
    %c0_i32_0 = arith.constant 0 : i32
    %c0_i32_1 = arith.constant 0 : i32
    return %c0_i32, %c0_i32_0 : i32, i32
  }
  func.func @transform_5(%arg0: i32) -> (i32, i32) {
    %c0_i32 = arith.constant 0 : i32
    %c0_i32_0 = arith.constant 0 : i32
    return %arg0, %c0_i32 : i32, i32
  }
}

</mosaic_0001>

<llo_original>
// kernel: _forward_impl.1
$region0: #{_forward_impl.1}
  #allocation0 [shape = 'u32[]', space=smem, size = 0x4, offset = 0x4, fixed_abs, tag = 'smem constant byte address 0x4 - core index']
  #allocation1 [shape = 'u32[144,128]{1,0:T(1,128)}', space=vmem, size = 0x12000, scoped, tag = 'internal scratch']
  %s0 = inlined_call_operand.vmem [shape: bf16[8,768], index: 0, kind: input, shape index: {}]
  %s1 = inlined_call_operand.vmem [shape: bf16[768,16], index: 1, kind: input, shape index: {}]
  %s2 = inlined_call_operand.vmem [shape: f32[1,16], index: 2, kind: input, shape index: {}]
  %s3 = inlined_call_operand.vmem [shape: bf16[16,768], index: 3, kind: input, shape index: {}]
  %s4 = inlined_call_operand.vmem [shape: f32[1,768], index: 4, kind: input, shape index: {}]
  %s5 = inlined_call_operand.vmem [shape: bf16[8,768], index: 5, kind: output, shape index: {}]
  %s6 = sld [smem:[#allocation0]]
  $region30: #{_forward_impl.1} parent=0
    _
  %s8 = ssub.s32 1, %s6
  %s9 = scalar_select 0, %s8, %s6
  // Predicated region
  $region2: #{_forward_impl.1} parent=0 // pred_check
    _
  $region3: #{_forward_impl.1} parent=0 // pred_check_branch
    %11 = sbr.rel (0) target = $region5
  $region4: #{_forward_impl.1} parent=0 // pred_region
    _
  $region5: #{_forward_impl.1} parent=0 // pred_fallthru
    _
  // Predicated region
  $region6: #{_forward_impl.1} parent=0 // pred_check
    _
  $region7: #{_forward_impl.1} parent=0 // pred_check_branch
    %13 = sbr.rel (0) target = $region9
  $region8: #{_forward_impl.1} parent=0 // pred_region
    _
  $region9: #{_forward_impl.1} parent=0 // pred_fallthru
    _
  // Predicated region
  $region10: #{_forward_impl.1} parent=0 // pred_check
    _
  $region11: #{_forward_impl.1} parent=0 // pred_check_branch
    %15 = sbr.rel (0) target = $region13
  $region12: #{_forward_impl.1} parent=0 // pred_region
    _
  $region13: #{_forward_impl.1} parent=0 // pred_fallthru
    _
  // Predicated region
  $region14: #{_forward_impl.1} parent=0 // pred_check
    _
  $region15: #{_forward_impl.1} parent=0 // pred_check_branch
    %17 = sbr.rel (0) target = $region17
  $region16: #{_forward_impl.1} parent=0 // pred_region
    _
  $region17: #{_forward_impl.1} parent=0 // pred_fallthru
    _
  // Predicated region
  $region18: #{_forward_impl.1} parent=0 // pred_check
    _
  $region19: #{_forward_impl.1} parent=0 // pred_check_branch
    %19 = sbr.rel (0) target = $region21
  $region20: #{_forward_impl.1} parent=0 // pred_region
    _
  $region21: #{_forward_impl.1} parent=0 // pred_fallthru
    _
  %v21 = vld [vmem:[%s0] sm:$0xff]
  %v22 = vld [vmem:[%s0 + $0x8] sm:$0xff]
  %v23 = vld [vmem:[%s0 + $0x10] sm:$0xff]
  %v24 = vld [vmem:[%s1] sm:$0xf]
  %v25 = vld [vmem:[%s1 + $0x4] sm:$0xf]
  %v26 = vld [vmem:[%s1 + $0x8] sm:$0xf]
  %v27 = vld [vmem:[%s1 + $0xc] sm:$0xf]
  %v28 = vld [vmem:[%s1 + $0x10] sm:$0xf]
  %v29 = vld [vmem:[%s1 + $0x14] sm:$0xf]
  %v30 = vld [vmem:[%s1 + $0x18] sm:$0xf]
  %v31 = vld [vmem:[%s1 + $0x1c] sm:$0xf]
  %v32 = vld [vmem:[%s1 + $0x20] sm:$0xf]
  %v33 = vld [vmem:[%s1 + $0x24] sm:$0xf]
  %v34 = vld [vmem:[%s1 + $0x28] sm:$0xf]
  %v35 = vld [vmem:[%s1 + $0x2c] sm:$0xf]
  %v36 = vld [vmem:[%s1 + $0x30] sm:$0xf]
  %v37 = vld [vmem:[%s1 + $0x34] sm:$0xf]
  %v38 = vld [vmem:[%s1 + $0x38] sm:$0xf]
  %v39 = vld [vmem:[%s1 + $0x3c] sm:$0xf]
  %v40 = vld [vmem:[%s1 + $0x40] sm:$0xf]
  %v41 = vld [vmem:[%s1 + $0x44] sm:$0xf]
  %v42 = vld [vmem:[%s1 + $0x48] sm:$0xf]
  %v43 = vld [vmem:[%s1 + $0x4c] sm:$0xf]
  %v44 = vld [vmem:[%s1 + $0x50] sm:$0xf]
  %v45 = vld [vmem:[%s1 + $0x54] sm:$0xf]
  %v46 = vld [vmem:[%s1 + $0x58] sm:$0xf]
  %v47 = vld [vmem:[%s1 + $0x5c] sm:$0xf]
  %v48 = vld [vmem:[%s1 + $0x60] sm:$0xf]
  %v49 = vld [vmem:[%s1 + $0x64] sm:$0xf]
  %v50 = vld [vmem:[%s1 + $0x68] sm:$0xf]
  %v51 = vld [vmem:[%s1 + $0x6c] sm:$0xf]
  %v52 = vld [vmem:[%s1 + $0x70] sm:$0xf]
  %v53 = vld [vmem:[%s1 + $0x74] sm:$0xf]
  %v54 = vld [vmem:[%s1 + $0x78] sm:$0xf]
  %v55 = vld [vmem:[%s1 + $0x7c] sm:$0xf]
  %v56 = vld [vmem:[%s1 + $0x80] sm:$0xf]
  %v57 = vld [vmem:[%s1 + $0x84] sm:$0xf]
  %v58 = vld [vmem:[%s1 + $0x88] sm:$0xf]
  %v59 = vld [vmem:[%s1 + $0x8c] sm:$0xf]
  %v60 = vld [vmem:[%s1 + $0x90] sm:$0xf]
  %v61 = vld [vmem:[%s1 + $0x94] sm:$0xf]
  %v62 = vld [vmem:[%s1 + $0x98] sm:$0xf]
  %v63 = vld [vmem:[%s1 + $0x9c] sm:$0xf]
  %v64 = vld [vmem:[%s1 + $0xa0] sm:$0xf]
  %v65 = vld [vmem:[%s1 + $0xa4] sm:$0xf]
  %v66 = vld [vmem:[%s1 + $0xa8] sm:$0xf]
  %v67 = vld [vmem:[%s1 + $0xac] sm:$0xf]
  %v68 = vld [vmem:[%s1 + $0xb0] sm:$0xf]
  %v69 = vld [vmem:[%s1 + $0xb4] sm:$0xf]
  %v70 = vld [vmem:[%s1 + $0xb8] sm:$0xf]
  %v71 = vld [vmem:[%s1 + $0xbc] sm:$0xf]
  %v72 = vld [vmem:[%s1 + $0xc0] sm:$0xf]
  %v73 = vld [vmem:[%s1 + $0xc4] sm:$0xf]
  %v74 = vld [vmem:[%s1 + $0xc8] sm:$0xf]
  %v75 = vld [vmem:[%s1 + $0xcc] sm:$0xf]
  %v76 = vld [vmem:[%s1 + $0xd0] sm:$0xf]
  %v77 = vld [vmem:[%s1 + $0xd4] sm:$0xf]
  %v78 = vld [vmem:[%s1 + $0xd8] sm:$0xf]
  %v79 = vld [vmem:[%s1 + $0xdc] sm:$0xf]
  %v80 = vld [vmem:[%s1 + $0xe0] sm:$0xf]
  %v81 = vld [vmem:[%s1 + $0xe4] sm:$0xf]
  %v82 = vld [vmem:[%s1 + $0xe8] sm:$0xf]
  %v83 = vld [vmem:[%s1 + $0xec] sm:$0xf]
  %v84 = vld [vmem:[%s1 + $0xf0] sm:$0xf]
  %v85 = vld [vmem:[%s1 + $0xf4] sm:$0xf]
  %v86 = vld [vmem:[%s1 + $0xf8] sm:$0xf]
  %v87 = vld [vmem:[%s1 + $0xfc] sm:$0xf]
  %v88 = vld [vmem:[%s1 + $0x100] sm:$0xf]
  %v89 = vld [vmem:[%s1 + $0x104] sm:$0xf]
  %v90 = vld [vmem:[%s1 + $0x108] sm:$0xf]
  %v91 = vld [vmem:[%s1 + $0x10c] sm:$0xf]
  %v92 = vld [vmem:[%s1 + $0x110] sm:$0xf]
  %v93 = vld [vmem:[%s1 + $0x114] sm:$0xf]
  %v94 = vld [vmem:[%s1 + $0x118] sm:$0xf]
  %v95 = vld [vmem:[%s1 + $0x11c] sm:$0xf]
  %v96 = vld [vmem:[%s1 + $0x120] sm:$0xf]
  %v97 = vld [vmem:[%s1 + $0x124] sm:$0xf]
  %v98 = vld [vmem:[%s1 + $0x128] sm:$0xf]
  %v99 = vld [vmem:[%s1 + $0x12c] sm:$0xf]
  %v100 = vld [vmem:[%s1 + $0x130] sm:$0xf]
  %v101 = vld [vmem:[%s1 + $0x134] sm:$0xf]
  %v102 = vld [vmem:[%s1 + $0x138] sm:$0xf]
  %v103 = vld [vmem:[%s1 + $0x13c] sm:$0xf]
  %v104 = vld [vmem:[%s1 + $0x140] sm:$0xf]
  %v105 = vld [vmem:[%s1 + $0x144] sm:$0xf]
  %v106 = vld [vmem:[%s1 + $0x148] sm:$0xf]
  %v107 = vld [vmem:[%s1 + $0x14c] sm:$0xf]
  %v108 = vld [vmem:[%s1 + $0x150] sm:$0xf]
  %v109 = vld [vmem:[%s1 + $0x154] sm:$0xf]
  %v110 = vld [vmem:[%s1 + $0x158] sm:$0xf]
  %v111 = vld [vmem:[%s1 + $0x15c] sm:$0xf]
  %v112 = vld [vmem:[%s1 + $0x160] sm:$0xf]
  %v113 = vld [vmem:[%s1 + $0x164] sm:$0xf]
  %v114 = vld [vmem:[%s1 + $0x168] sm:$0xf]
  %v115 = vld [vmem:[%s1 + $0x16c] sm:$0xf]
  %v116 = vld [vmem:[%s1 + $0x170] sm:$0xf]
  %v117 = vld [vmem:[%s1 + $0x174] sm:$0xf]
  %v118 = vld [vmem:[%s1 + $0x178] sm:$0xf]
  %v119 = vld [vmem:[%s1 + $0x17c] sm:$0xf]
  %v120 = vld [vmem:[%s2] sm:$0x1]
  %v122 = vlaneseq
  %v123 = vshrl.u32 %v122, 7
  %v124 = vsub.s32 0, %v123
  %v125 = vrot.slane %v120, %v124
  %v130 = vunpack.c.l.b16 %v21
  %v131 = vunpack.c.h.b16 %v21
  %v132 = vunpack.c.l.b16 %v22
  %v133 = vunpack.c.h.b16 %v22
  %v134 = vunpack.c.l.b16 %v23
  %v135 = vunpack.c.h.b16 %v23
  %v136 = vpack.c.b16 %v130, %v130
  %v137 = vpack.c.b16 %v131, %v131
  %v138 = vpack.c.b16 %v132, %v132
  %v139 = vpack.c.b16 %v133, %v133
  %v140 = vpack.c.b16 %v134, %v134
  %v141 = vpack.c.b16 %v135, %v135
  %v244 = vunpack.c.l.b16 %v24
  %v245 = vunpack.c.l.b16 %v25
  %v246 = vunpack.c.l.b16 %v26
  %v247 = vunpack.c.l.b16 %v27
  %v248 = vunpack.c.l.b16 %v28
  %v249 = vunpack.c.l.b16 %v29
  %v250 = vunpack.c.l.b16 %v30
  %v251 = vunpack.c.l.b16 %v31
  %v252 = vunpack.c.l.b16 %v32
  %v253 = vunpack.c.l.b16 %v33
  %v254 = vunpack.c.l.b16 %v34
  %v255 = vunpack.c.l.b16 %v35
  %v256 = vunpack.c.l.b16 %v36
  %v257 = vunpack.c.l.b16 %v37
  %v258 = vunpack.c.l.b16 %v38
  %v259 = vunpack.c.l.b16 %v39
  %v260 = vunpack.c.l.b16 %v40
  %v261 = vunpack.c.l.b16 %v41
  %v262 = vunpack.c.l.b16 %v42
  %v263 = vunpack.c.l.b16 %v43
  %v264 = vunpack.c.l.b16 %v44
  %v265 = vunpack.c.l.b16 %v45
  %v266 = vunpack.c.l.b16 %v46
  %v267 = vunpack.c.l.b16 %v47
  %v268 = vunpack.c.l.b16 %v48
  %v269 = vunpack.c.l.b16 %v49
  %v270 = vunpack.c.l.b16 %v50
  %v271 = vunpack.c.l.b16 %v51
  %v272 = vunpack.c.l.b16 %v52
  %v273 = vunpack.c.l.b16 %v53
  %v274 = vunpack.c.l.b16 %v54
  %v275 = vunpack.c.l.b16 %v55
  %v276 = vunpack.c.l.b16 %v56
  %v277 = vunpack.c.l.b16 %v57
  %v278 = vunpack.c.l.b16 %v58
  %v279 = vunpack.c.l.b16 %v59
  %v280 = vunpack.c.l.b16 %v60
  %v281 = vunpack.c.l.b16 %v61
  %v282 = vunpack.c.l.b16 %v62
  %v283 = vunpack.c.l.b16 %v63
  %v284 = vunpack.c.l.b16 %v64
  %v285 = vunpack.c.l.b16 %v65
  %v286 = vunpack.c.l.b16 %v66
  %v287 = vunpack.c.l.b16 %v67
  %v288 = vunpack.c.l.b16 %v68
  %v289 = vunpack.c.l.b16 %v69
  %v290 = vunpack.c.l.b16 %v70
  %v291 = vunpack.c.l.b16 %v71
  %v292 = vunpack.c.l.b16 %v72
  %v293 = vunpack.c.l.b16 %v73
  %v294 = vunpack.c.l.b16 %v74
  %v295 = vunpack.c.l.b16 %v75
  %v296 = vunpack.c.l.b16 %v76
  %v297 = vunpack.c.l.b16 %v77
  %v298 = vunpack.c.l.b16 %v78
  %v299 = vunpack.c.l.b16 %v79
  %v300 = vunpack.c.l.b16 %v80
  %v301 = vunpack.c.l.b16 %v81
  %v302 = vunpack.c.l.b16 %v82
  %v303 = vunpack.c.l.b16 %v83
  %v304 = vunpack.c.l.b16 %v84
  %v305 = vunpack.c.l.b16 %v85
  %v306 = vunpack.c.l.b16 %v86
  %v307 = vunpack.c.l.b16 %v87
  %v308 = vunpack.c.l.b16 %v88
  %v309 = vunpack.c.l.b16 %v89
  %v310 = vunpack.c.l.b16 %v90
  %v311 = vunpack.c.l.b16 %v91
  %v312 = vunpack.c.l.b16 %v92
  %v313 = vunpack.c.l.b16 %v93
  %v314 = vunpack.c.l.b16 %v94
  %v315 = vunpack.c.l.b16 %v95
  %v316 = vunpack.c.l.b16 %v96
  %v317 = vunpack.c.l.b16 %v97
  %v318 = vunpack.c.l.b16 %v98
  %v319 = vunpack.c.l.b16 %v99
  %v320 = vunpack.c.l.b16 %v100
  %v321 = vunpack.c.l.b16 %v101
  %v322 = vunpack.c.l.b16 %v102
  %v323 = vunpack.c.l.b16 %v103
  %v324 = vunpack.c.l.b16 %v104
  %v325 = vunpack.c.l.b16 %v105
  %v326 = vunpack.c.l.b16 %v106
  %v327 = vunpack.c.l.b16 %v107
  %v328 = vunpack.c.l.b16 %v108
  %v329 = vunpack.c.l.b16 %v109
  %v330 = vunpack.c.l.b16 %v110
  %v331 = vunpack.c.l.b16 %v111
  %v332 = vunpack.c.l.b16 %v112
  %v333 = vunpack.c.l.b16 %v113
  %v334 = vunpack.c.l.b16 %v114
  %v335 = vunpack.c.l.b16 %v115
  %v336 = vunpack.c.l.b16 %v116
  %v337 = vunpack.c.l.b16 %v117
  %v338 = vunpack.c.l.b16 %v118
  %v339 = vunpack.c.l.b16 %v119
  %v340 = vpack.c.b16 %v245, %v244
  %v341 = vpack.c.b16 %v247, %v246
  %v342 = vpack.c.b16 %v249, %v248
  %v343 = vpack.c.b16 %v251, %v250
  %v344 = vpack.c.b16 %v253, %v252
  %v345 = vpack.c.b16 %v255, %v254
  %v346 = vpack.c.b16 %v257, %v256
  %v347 = vpack.c.b16 %v259, %v258
  %v348 = vpack.c.b16 %v261, %v260
  %v349 = vpack.c.b16 %v263, %v262
  %v350 = vpack.c.b16 %v265, %v264
  %v351 = vpack.c.b16 %v267, %v266
  %v352 = vpack.c.b16 %v269, %v268
  %v353 = vpack.c.b16 %v271, %v270
  %v354 = vpack.c.b16 %v273, %v272
  %v355 = vpack.c.b16 %v275, %v274
  %v356 = vpack.c.b16 %v277, %v276
  %v357 = vpack.c.b16 %v279, %v278
  %v358 = vpack.c.b16 %v281, %v280
  %v359 = vpack.c.b16 %v283, %v282
  %v360 = vpack.c.b16 %v285, %v284
  %v361 = vpack.c.b16 %v287, %v286
  %v362 = vpack.c.b16 %v289, %v288
  %v363 = vpack.c.b16 %v291, %v290
  %v364 = vpack.c.b16 %v293, %v292
  %v365 = vpack.c.b16 %v295, %v294
  %v366 = vpack.c.b16 %v297, %v296
  %v367 = vpack.c.b16 %v299, %v298
  %v368 = vpack.c.b16 %v301, %v300
  %v369 = vpack.c.b16 %v303, %v302
  %v370 = vpack.c.b16 %v305, %v304
  %v371 = vpack.c.b16 %v307, %v306
  %v372 = vpack.c.b16 %v309, %v308
  %v373 = vpack.c.b16 %v311, %v310
  %v374 = vpack.c.b16 %v313, %v312
  %v375 = vpack.c.b16 %v315, %v314
  %v376 = vpack.c.b16 %v317, %v316
  %v377 = vpack.c.b16 %v319, %v318
  %v378 = vpack.c.b16 %v321, %v320
  %v379 = vpack.c.b16 %v323, %v322
  %v380 = vpack.c.b16 %v325, %v324
  %v381 = vpack.c.b16 %v327, %v326
  %v382 = vpack.c.b16 %v329, %v328
  %v383 = vpack.c.b16 %v331, %v330
  %v384 = vpack.c.b16 %v333, %v332
  %v385 = vpack.c.b16 %v335, %v334
  %v386 = vpack.c.b16 %v337, %v336
  %v387 = vpack.c.b16 %v339, %v338
  %436 = vmatprep.subr.bf16.mxu0 0
  %437 = vmatpush1.bf16.msra.mxu0 %v340
  %438 = vmatprep.subr.bf16.mxu0 0
  %439 = vmatpush1.bf16.msra.mxu0 %v341
  %440 = vmatprep.subr.bf16.mxu0 0
  %441 = vmatpush1.bf16.msra.mxu0 %v342
  %442 = vmatprep.subr.bf16.mxu0 0
  %443 = vmatpush1.bf16.msra.mxu0 %v343
  %444 = vmatprep.subr.bf16.mxu0 0
  %445 = vmatpush1.bf16.msra.mxu0 %v344
  %446 = vmatprep.subr.bf16.mxu0 0
  %447 = vmatpush1.bf16.msra.mxu0 %v345
  %448 = vmatprep.subr.bf16.mxu0 0
  %449 = vmatpush1.bf16.msra.mxu0 %v346
  %450 = vmatprep.subr.bf16.mxu0 0
  %451 = vmatpush1.bf16.msra.mxu0 %v347
  %452 = vmatprep.subr.bf16.mxu0 0
  %453 = vmatpush1.bf16.msra.mxu0 %v348
  %454 = vmatprep.subr.bf16.mxu0 0
  %455 = vmatpush1.bf16.msra.mxu0 %v349
  %456 = vmatprep.subr.bf16.mxu0 0
  %457 = vmatpush1.bf16.msra.mxu0 %v350
  %458 = vmatprep.subr.bf16.mxu0 0
  %459 = vmatpush1.bf16.msra.mxu0 %v351
  %460 = vmatprep.subr.bf16.mxu0 0
  %461 = vmatpush1.bf16.msra.mxu0 %v352
  %462 = vmatprep.subr.bf16.mxu0 0
  %463 = vmatpush1.bf16.msra.mxu0 %v353
  %464 = vmatprep.subr.bf16.mxu0 0
  %465 = vmatpush1.bf16.msra.mxu0 %v354
  %466 = vmatprep.subr.bf16.mxu0 0
  %467 = vmatpush1.bf16.msra.mxu0 %v355
  %468 = vmatprep.mubr.bf16.mxu0 %v137
  %469 = vmatmul.mubr.bf16.gmra.mrb[0].mxu0 %v136
  %v470 = vpop.f32.mrb[0].mxu0
  %v471 = vadd.f32 %v125, %v470
  %v472 = vpop.f32.mrb[0].mxu0
  %v473 = vpop.f32.mrb[0].mxu0
  %v474 = vpop.f32.mrb[0].mxu0
  %475 = vdwg.mxu0
  %476 = vmatprep.subr.bf16.mxu0 0
  %477 = vmatpush1.bf16.msra.mxu0 %v356
  %478 = vmatprep.subr.bf16.mxu0 0
  %479 = vmatpush1.bf16.msra.mxu0 %v357
  %480 = vmatprep.subr.bf16.mxu0 0
  %481 = vmatpush1.bf16.msra.mxu0 %v358
  %482 = vmatprep.subr.bf16.mxu0 0
  %483 = vmatpush1.bf16.msra.mxu0 %v359
  %484 = vmatprep.subr.bf16.mxu0 0
  %485 = vmatpush1.bf16.msra.mxu0 %v360
  %486 = vmatprep.subr.bf16.mxu0 0
  %487 = vmatpush1.bf16.msra.mxu0 %v361
  %488 = vmatprep.subr.bf16.mxu0 0
  %489 = vmatpush1.bf16.msra.mxu0 %v362
  %490 = vmatprep.subr.bf16.mxu0 0
  %491 = vmatpush1.bf16.msra.mxu0 %v363
  %492 = vmatprep.subr.bf16.mxu0 0
  %493 = vmatpush1.bf16.msra.mxu0 %v364
  %494 = vmatprep.subr.bf16.mxu0 0
  %495 = vmatpush1.bf16.msra.mxu0 %v365
  %496 = vmatprep.subr.bf16.mxu0 0
  %497 = vmatpush1.bf16.msra.mxu0 %v366
  %498 = vmatprep.subr.bf16.mxu0 0
  %499 = vmatpush1.bf16.msra.mxu0 %v367
  %500 = vmatprep.subr.bf16.mxu0 0
  %501 = vmatpush1.bf16.msra.mxu0 %v368
  %502 = vmatprep.subr.bf16.mxu0 0
  %503 = vmatpush1.bf16.msra.mxu0 %v369
  %504 = vmatprep.subr.bf16.mxu0 0
  %505 = vmatpush1.bf16.msra.mxu0 %v370
  %506 = vmatprep.subr.bf16.mxu0 0
  %507 = vmatpush1.bf16.msra.mxu0 %v371
  %508 = vmatprep.mubr.bf16.mxu0 %v139
  %509 = vmatmul.mubr.bf16.gmra.mrb[0].mxu0 %v138
  %v510 = vpop.f32.mrb[0].mxu0
  %v511 = vadd.f32 %v471, %v510
  %v512 = vpop.f32.mrb[0].mxu0
  %v513 = vpop.f32.mrb[0].mxu0
  %v514 = vpop.f32.mrb[0].mxu0
  %515 = vdwg.mxu0
  %516 = vmatprep.subr.bf16.mxu0 0
  %517 = vmatpush1.bf16.msra.mxu0 %v372
  %518 = vmatprep.subr.bf16.mxu0 0
  %519 = vmatpush1.bf16.msra.mxu0 %v373
  %520 = vmatprep.subr.bf16.mxu0 0
  %521 = vmatpush1.bf16.msra.mxu0 %v374
  %522 = vmatprep.subr.bf16.mxu0 0
  %523 = vmatpush1.bf16.msra.mxu0 %v375
  %524 = vmatprep.subr.bf16.mxu0 0
  %525 = vmatpush1.bf16.msra.mxu0 %v376
  %526 = vmatprep.subr.bf16.mxu0 0
  %527 = vmatpush1.bf16.msra.mxu0 %v377
  %528 = vmatprep.subr.bf16.mxu0 0
  %529 = vmatpush1.bf16.msra.mxu0 %v378
  %530 = vmatprep.subr.bf16.mxu0 0
  %531 = vmatpush1.bf16.msra.mxu0 %v379
  %532 = vmatprep.subr.bf16.mxu0 0
  %533 = vmatpush1.bf16.msra.mxu0 %v380
  %534 = vmatprep.subr.bf16.mxu0 0
  %535 = vmatpush1.bf16.msra.mxu0 %v381
  %536 = vmatprep.subr.bf16.mxu0 0
  %537 = vmatpush1.bf16.msra.mxu0 %v382
  %538 = vmatprep.subr.bf16.mxu0 0
  %539 = vmatpush1.bf16.msra.mxu0 %v383
  %540 = vmatprep.subr.bf16.mxu0 0
  %541 = vmatpush1.bf16.msra.mxu0 %v384
  %542 = vmatprep.subr.bf16.mxu0 0
  %543 = vmatpush1.bf16.msra.mxu0 %v385
  %544 = vmatprep.subr.bf16.mxu0 0
  %545 = vmatpush1.bf16.msra.mxu0 %v386
  %546 = vmatprep.subr.bf16.mxu0 0
  %547 = vmatpush1.bf16.msra.mxu0 %v387
  %548 = vmatprep.mubr.bf16.mxu0 %v141
  %549 = vmatmul.mubr.bf16.gmra.mrb[0].mxu0 %v140
  %v550 = vpop.f32.mrb[0].mxu0
  %v551 = vadd.f32 %v511, %v550
  %v552 = vpop.f32.mrb[0].mxu0
  %v553 = vpop.f32.mrb[0].mxu0
  %v554 = vpop.f32.mrb[0].mxu0
  %555 = vdwg.mxu0
  %v556 = vpack.c.bf16 %v551, %v551
  %v557 = vld [vmem:[%s3] sm:$0xff]
  %v558 = vld [vmem:[%s3 + $0x8] sm:$0xff]
  %v559 = vld [vmem:[%s3 + $0x10] sm:$0xff]
  %v560 = vld [vmem:[%s3 + $0x18] sm:$0xff]
  %v561 = vld [vmem:[%s3 + $0x20] sm:$0xff]
  %v562 = vld [vmem:[%s3 + $0x28] sm:$0xff]
  %v563 = vld [vmem:[%s4] sm:$0x3f]
  %v565 = vlaneseq
  %v566 = vshrl.u32 %v565, 7
  %v567 = vsub.s32 0, %v566
  %v568 = vrot.slane %v563, %v567
  %v569 = vlaneseq
  %v570 = vshrl.u32 %v569, 7
  %v571 = vsub.s32 1, %v570
  %v572 = vrot.slane %v563, %v571
  %v573 = vlaneseq
  %v574 = vshrl.u32 %v573, 7
  %v575 = vsub.s32 2, %v574
  %v576 = vrot.slane %v563, %v575
  %v577 = vlaneseq
  %v578 = vshrl.u32 %v577, 7
  %v579 = vsub.s32 3, %v578
  %v580 = vrot.slane %v563, %v579
  %v581 = vlaneseq
  %v582 = vshrl.u32 %v581, 7
  %v583 = vsub.s32 4, %v582
  %v584 = vrot.slane %v563, %v583
  %v585 = vlaneseq
  %v586 = vshrl.u32 %v585, 7
  %v587 = vsub.s32 5, %v586
  %v588 = vrot.slane %v563, %v587
  %v601 = vunpack.c.l.b16 %v557
  %v602 = vunpack.c.h.b16 %v557
  %v603 = vunpack.c.l.b16 %v558
  %v604 = vunpack.c.h.b16 %v558
  %v605 = vunpack.c.l.b16 %v559
  %v606 = vunpack.c.h.b16 %v559
  %v607 = vunpack.c.l.b16 %v560
  %v608 = vunpack.c.h.b16 %v560
  %v609 = vunpack.c.l.b16 %v561
  %v610 = vunpack.c.h.b16 %v561
  %v611 = vunpack.c.l.b16 %v562
  %v612 = vunpack.c.h.b16 %v562
  %v613 = vpack.c.b16 %v607, %v601
  %v614 = vpack.c.b16 %v608, %v602
  %v615 = vpack.c.b16 %v609, %v603
  %v616 = vpack.c.b16 %v610, %v604
  %v617 = vpack.c.b16 %v611, %v605
  %v618 = vpack.c.b16 %v612, %v606
  %vm625 = vcmask 130048
  %v627 = vsel %vm625, %v556, 0
  %629 = vmatprep.subr.bf16.mxu0 %v614
  %630 = vmatpush1.bf16.msra.mxu0 %v613
  %631 = vmatprep.subr.bf16.mxu0 0
  %632 = vmatpush1.bf16.msra.mxu0 0
  %633 = vmatprep.subr.bf16.mxu0 0
  %634 = vmatpush1.bf16.msra.mxu0 0
  %635 = vmatprep.subr.bf16.mxu0 0
  %636 = vmatpush1.bf16.msra.mxu0 0
  %637 = vmatprep.subr.bf16.mxu0 0
  %638 = vmatpush1.bf16.msra.mxu0 0
  %639 = vmatprep.subr.bf16.mxu0 0
  %640 = vmatpush1.bf16.msra.mxu0 0
  %641 = vmatprep.subr.bf16.mxu0 0
  %642 = vmatpush1.bf16.msra.mxu0 0
  %643 = vmatprep.subr.bf16.mxu0 0
  %644 = vmatpush1.bf16.msra.mxu0 0
  %645 = vmatprep.subr.bf16.mxu0 0
  %646 = vmatpush1.bf16.msra.mxu0 0
  %647 = vmatprep.subr.bf16.mxu0 0
  %648 = vmatpush1.bf16.msra.mxu0 0
  %649 = vmatprep.subr.bf16.mxu0 0
  %650 = vmatpush1.bf16.msra.mxu0 0
  %651 = vmatprep.subr.bf16.mxu0 0
  %652 = vmatpush1.bf16.msra.mxu0 0
  %653 = vmatprep.subr.bf16.mxu0 0
  %654 = vmatpush1.bf16.msra.mxu0 0
  %655 = vmatprep.subr.bf16.mxu0 0
  %656 = vmatpush1.bf16.msra.mxu0 0
  %657 = vmatprep.subr.bf16.mxu0 0
  %658 = vmatpush1.bf16.msra.mxu0 0
  %659 = vmatprep.subr.bf16.mxu0 0
  %660 = vmatpush1.bf16.msra.mxu0 0
  %661 = vmatprep.mubr.bf16.mxu0 0
  %662 = vmatmul.mubr.bf16.gmra.mrb[0].mxu0 %v627
  %v663 = vpop.f32.mrb[0].mxu0
  %v664 = vadd.f32 %v568, %v663
  %v665 = vpop.f32.mrb[0].mxu0
  %v666 = vadd.f32 %v572, %v665
  %v667 = vpop.f32.mrb[0].mxu0
  %v668 = vpop.f32.mrb[0].mxu0
  %669 = vdwg.mxu0
  %670 = vmatprep.subr.bf16.mxu0 %v616
  %671 = vmatpush1.bf16.msra.mxu0 %v615
  %672 = vmatprep.subr.bf16.mxu0 0
  %673 = vmatpush1.bf16.msra.mxu0 0
  %674 = vmatprep.subr.bf16.mxu0 0
  %675 = vmatpush1.bf16.msra.mxu0 0
  %676 = vmatprep.subr.bf16.mxu0 0
  %677 = vmatpush1.bf16.msra.mxu0 0
  %678 = vmatprep.subr.bf16.mxu0 0
  %679 = vmatpush1.bf16.msra.mxu0 0
  %680 = vmatprep.subr.bf16.mxu0 0
  %681 = vmatpush1.bf16.msra.mxu0 0
  %682 = vmatprep.subr.bf16.mxu0 0
  %683 = vmatpush1.bf16.msra.mxu0 0
  %684 = vmatprep.subr.bf16.mxu0 0
  %685 = vmatpush1.bf16.msra.mxu0 0
  %686 = vmatprep.subr.bf16.mxu0 0
  %687 = vmatpush1.bf16.msra.mxu0 0
  %688 = vmatprep.subr.bf16.mxu0 0
  %689 = vmatpush1.bf16.msra.mxu0 0
  %690 = vmatprep.subr.bf16.mxu0 0
  %691 = vmatpush1.bf16.msra.mxu0 0
  %692 = vmatprep.subr.bf16.mxu0 0
  %693 = vmatpush1.bf16.msra.mxu0 0
  %694 = vmatprep.subr.bf16.mxu0 0
  %695 = vmatpush1.bf16.msra.mxu0 0
  %696 = vmatprep.subr.bf16.mxu0 0
  %697 = vmatpush1.bf16.msra.mxu0 0
  %698 = vmatprep.subr.bf16.mxu0 0
  %699 = vmatpush1.bf16.msra.mxu0 0
  %700 = vmatprep.subr.bf16.mxu0 0
  %701 = vmatpush1.bf16.msra.mxu0 0
  %702 = vmatprep.mubr.bf16.mxu0 0
  %703 = vmatmul.mubr.bf16.gmra.mrb[0].mxu0 %v627
  %v704 = vpop.f32.mrb[0].mxu0
  %v705 = vadd.f32 %v576, %v704
  %v706 = vpop.f32.mrb[0].mxu0
  %v707 = vadd.f32 %v580, %v706
  %v708 = vpop.f32.mrb[0].mxu0
  %v709 = vpop.f32.mrb[0].mxu0
  %710 = vdwg.mxu0
  %711 = vmatprep.subr.bf16.mxu0 %v618
  %712 = vmatpush1.bf16.msra.mxu0 %v617
  %713 = vmatprep.subr.bf16.mxu0 0
  %714 = vmatpush1.bf16.msra.mxu0 0
  %715 = vmatprep.subr.bf16.mxu0 0
  %716 = vmatpush1.bf16.msra.mxu0 0
  %717 = vmatprep.subr.bf16.mxu0 0
  %718 = vmatpush1.bf16.msra.mxu0 0
  %719 = vmatprep.subr.bf16.mxu0 0
  %720 = vmatpush1.bf16.msra.mxu0 0
  %721 = vmatprep.subr.bf16.mxu0 0
  %722 = vmatpush1.bf16.msra.mxu0 0
  %723 = vmatprep.subr.bf16.mxu0 0
  %724 = vmatpush1.bf16.msra.mxu0 0
  %725 = vmatprep.subr.bf16.mxu0 0
  %726 = vmatpush1.bf16.msra.mxu0 0
  %727 = vmatprep.subr.bf16.mxu0 0
  %728 = vmatpush1.bf16.msra.mxu0 0
  %729 = vmatprep.subr.bf16.mxu0 0
  %730 = vmatpush1.bf16.msra.mxu0 0
  %731 = vmatprep.subr.bf16.mxu0 0
  %732 = vmatpush1.bf16.msra.mxu0 0
  %733 = vmatprep.subr.bf16.mxu0 0
  %734 = vmatpush1.bf16.msra.mxu0 0
  %735 = vmatprep.subr.bf16.mxu0 0
  %736 = vmatpush1.bf16.msra.mxu0 0
  %737 = vmatprep.subr.bf16.mxu0 0
  %738 = vmatpush1.bf16.msra.mxu0 0
  %739 = vmatprep.subr.bf16.mxu0 0
  %740 = vmatpush1.bf16.msra.mxu0 0
  %741 = vmatprep.subr.bf16.mxu0 0
  %742 = vmatpush1.bf16.msra.mxu0 0
  %743 = vmatprep.mubr.bf16.mxu0 0
  %744 = vmatmul.mubr.bf16.gmra.mrb[0].mxu0 %v627
  %v745 = vpop.f32.mrb[0].mxu0
  %v746 = vadd.f32 %v584, %v745
  %v747 = vpop.f32.mrb[0].mxu0
  %v748 = vadd.f32 %v588, %v747
  %v749 = vpop.f32.mrb[0].mxu0
  %v750 = vpop.f32.mrb[0].mxu0
  %751 = vdwg.mxu0
  %v752 = vpack.c.bf16 %v664, %v664
  %v753 = vpack.c.bf16 %v666, %v666
  %v754 = vpack.c.bf16 %v705, %v705
  %v755 = vpack.c.bf16 %v707, %v707
  %v756 = vpack.c.bf16 %v746, %v746
  %v757 = vpack.c.bf16 %v748, %v748
  %v764 = vunpack.c.l.b16 %v752
  %v765 = vunpack.c.l.b16 %v753
  %v766 = vunpack.c.l.b16 %v754
  %v767 = vunpack.c.l.b16 %v755
  %v768 = vunpack.c.l.b16 %v756
  %v769 = vunpack.c.l.b16 %v757
  %v770 = vpack.c.b16 %v765, %v764
  %v771 = vpack.c.b16 %v767, %v766
  %v772 = vpack.c.b16 %v769, %v768
  %776 = vst [vmem:[%s5] sm:$0xff] %v770
  %777 = vst [vmem:[%s5 + $0x8] sm:$0xff] %v771
  %778 = vst [vmem:[%s5 + $0x10] sm:$0xff] %v772
  // Predicated region
  $region22: #{_forward_impl.1} parent=0 // pred_check
    _
  $region23: #{_forward_impl.1} parent=0 // pred_check_branch
    %780 = sbr.rel (0) target = $region25
  $region24: #{_forward_impl.1} parent=0 // pred_region
    _
  $region25: #{_forward_impl.1} parent=0 // pred_fallthru
    _
  // Predicated region
  $region26: #{_forward_impl.1} parent=0 // pred_check
    _
  $region27: #{_forward_impl.1} parent=0 // pred_check_branch
    %782 = sbr.rel (0) target = $region29
  $region28: #{_forward_impl.1} parent=0 // pred_region
    _
  $region29: #{_forward_impl.1} parent=0 // pred_fallthru
    _

</llo_original>
